<compile_context>
chip_gen: v7x
topology: tpu7x:2x2x1
jax: 0.10.0
libtpu: 0.0.40
codegen_flags: <defaults>
</compile_context>

<pallas_src>
import functools

import jax
import jax.numpy as jnp
from jax import lax
from jax.experimental import pallas as pl
from jax.experimental.pallas import tpu as pltpu

RGB_WEIGHT = 0.5
FLOW_WEIGHT = 1.0
USE_FLOW = True


def _warp_l1_kernel(cur_ref, prev_ref, coord_ref, out_ref, *, H, W, use_bf16):
    """Per-(batch, output-pixel-tile) bilinear warp + |cur - warped| partial sum."""
    cur = cur_ref[0]             # (C, TILE_P)   lane-dense current tile
    prev = prev_ref[0]           # (C, H, W)     full previous frame (resident)
    gx = coord_ref[0, 0:1, :]    # (1, TILE_P)   clipped absolute source x
    gy = coord_ref[0, 1:2, :]    # (1, TILE_P)   clipped absolute source y

    C, TILE_P = cur.shape

    # Bilinear corner indices / weights (border clamp already applied to gx/gy).
    x0f = jnp.floor(gx)
    y0f = jnp.floor(gy)
    wx = gx - x0f                                  # (1, TILE_P)
    wy = gy - y0f
    x0 = x0f.astype(jnp.int32)
    y0 = y0f.astype(jnp.int32)
    x1 = jnp.minimum(x0 + 1, W - 1)
    y1 = jnp.minimum(y0 + 1, H - 1)

    # Separable one-hot weights, built on the VPU: O((H+W)*TILE_P) work.
    xi = lax.broadcasted_iota(jnp.int32, (W, TILE_P), 0)
    ox = (jnp.where(xi == x0, 1.0 - wx, 0.0)
          + jnp.where(xi == x1, wx, 0.0))          # (W, TILE_P)
    yi = lax.broadcasted_iota(jnp.int32, (H, TILE_P), 0)
    oy = (jnp.where(yi == y0, 1.0 - wy, 0.0)
          + jnp.where(yi == y1, wy, 0.0))          # (H, TILE_P)

    # Horizontal interpolation on the MXU: (C*H, W) @ (W, TILE_P), f32 accum.
    prev_rows = prev.reshape(C * H, W)
    if use_bf16:                                   # v6e/v7x: bf16 operands
        hh = jnp.dot(prev_rows.astype(jnp.bfloat16), ox.astype(jnp.bfloat16),
                     preferred_element_type=jnp.float32)
    else:
        hh = jnp.dot(prev_rows, ox, preferred_element_type=jnp.float32)
    # hh[c*H + y, p] = row y of channel c of prev, interpolated at gx[p].

    # Vertical blend on the VPU (2-D ops only; C is tiny and static).
    parts = []
    for c in range(C):
        rows = hh[c * H:(c + 1) * H, :]            # (H, TILE_P) static slice
        parts.append(jnp.sum(rows * oy, axis=0, keepdims=True))
    warped = jnp.concatenate(parts, axis=0)        # (C, TILE_P)

    # Partial L1 sum for this (batch, tile), written as a full lane-dense tile.
    s = jnp.sum(jnp.abs(cur - warped))
    out_ref[...] = jnp.full(out_ref.shape, s, dtype=jnp.float32)


def _pick_tile_p(P, cap=1024):
    """Largest output-pixel tile that is a multiple of 128 and divides P."""
    t = min(P, cap)
    t -= t % 128
    while t >= 128:
        if P % t == 0:
            return t
        t -= 128
    if P <= 4096:              # guarded fallback: single (small) tile
        return P
    raise ValueError(
        f"H*W={P} has no 128-multiple divisor <= {cap}; pad the frame so H*W "
        "is a multiple of 128 (required for lane-dense tiling).")


def temporal_consistency_loss(current_frame, previous_frame, flow,
                              rgb_weight=RGB_WEIGHT, flow_weight=FLOW_WEIGHT,
                              use_flow=USE_FLOW, tile_p=None,
                              use_bf16_warp=False):
    cur = current_frame.astype(jnp.float32)
    prev = previous_frame.astype(jnp.float32)
    B, C, H, W = cur.shape
    P = H * W

    # Direct RGB consistency: mem-bound elementwise mean; XLA already runs it
    # at HBM roofline, so it stays out of the kernel (perf review item 4).
    rgb_loss = jnp.mean(jnp.abs(cur - prev))
    if not use_flow:
        return rgb_weight * rgb_loss + flow_weight * jnp.float32(0.0)

    TILE_P = _pick_tile_p(P) if tile_p is None else tile_p
    assert P % TILE_P == 0, (P, TILE_P)
    n_tp = P // TILE_P

    # Hoisted per-pixel coordinate math (no in-kernel int div/mod):
    # absolute source coords = pixel grid + flow (pixel units), border-clamped.
    flow32 = flow.astype(jnp.float32)
    col = jnp.arange(W, dtype=jnp.float32)[None, None, :]
    row = jnp.arange(H, dtype=jnp.float32)[None, :, None]
    gx = jnp.clip(col + flow32[:, 0], 0.0, float(W - 1))      # (B, H, W)
    gy = jnp.clip(row + flow32[:, 1], 0.0, float(H - 1))      # (B, H, W)
    coords = jnp.stack([gx, gy], axis=1).reshape(B, 2, P)     # lane-dense
    cur_flat = cur.reshape(B, C, P)                           # lane-dense

    kernel = functools.partial(_warp_l1_kernel, H=H, W=W, use_bf16=use_bf16_warp)

    cost = pl.CostEstimate(
        flops=B * n_tp * (2 * C * H * W * TILE_P        # MXU horizontal interp
                          + 3 * C * H * TILE_P          # VPU vertical blend
                          + 8 * (H + W) * TILE_P),      # one-hot build
        transcendentals=0,
        bytes_accessed=4 * (B * C * P                   # current (streamed once)
                            + B * C * P                 # previous (once per batch)
                            + B * 2 * P                 # coords
                            + B * n_tp * 8 * 128),      # partial sums
    )

    # Per-step VMEM budget (double-buffered inputs + elementwise temporaries);
    # only raise the scoped limit when needed (v7x: 64 MiB physical VMEM).
    vmem_need = 4 * (2 * C * H * W                      # prev (x2 buffers)
                     + 2 * C * TILE_P                   # cur
                     + 2 * 2 * TILE_P                   # coords
                     + 2 * 8 * 128                      # out tile
                     + 2 * (H + W) * TILE_P             # ox/oy + temps
                     + 2 * C * H * TILE_P               # hh + blend temps
                     + 2 * C * TILE_P)                  # warped / |diff|
    cp_kwargs = dict(dimension_semantics=("parallel", "parallel"))
    if vmem_need > 16 * 2**20:
        cp_kwargs["vmem_limit_bytes"] = int(min(vmem_need * 5 // 4, 96 * 2**20))

    partial = pl.pallas_call(
        kernel,
        out_shape=jax.ShapeDtypeStruct((B, n_tp, 8, 128), jnp.float32),
        grid=(B, n_tp),
        in_specs=[
            pl.BlockSpec((1, C, TILE_P), lambda b, tp: (b, 0, tp)),   # current
            pl.BlockSpec((1, C, H, W), lambda b, tp: (b, 0, 0, 0)),   # previous (resident per batch)
            pl.BlockSpec((1, 2, TILE_P), lambda b, tp: (b, 0, tp)),   # coords
        ],
        out_specs=pl.BlockSpec((1, 1, 8, 128), lambda b, tp: (b, tp, 0, 0)),
        compiler_params=pltpu.CompilerParams(**cp_kwargs),
        cost_estimate=cost,
    )(cur_flat, prev, coords)

    flow_loss = jnp.sum(partial[:, :, 0, 0]) / (B * C * P)
    return rgb_weight * rgb_loss + flow_weight * flow_loss


def _reference_loss(cur, prev, flow, rgb_weight=RGB_WEIGHT, flow_weight=FLOW_WEIGHT):
    """Pure-JAX reference (direct gather) for correctness checking."""
    B, C, H, W = cur.shape
    rgb = jnp.mean(jnp.abs(cur - prev))

    gx = jnp.clip(jnp.arange(W, dtype=jnp.float32)[None, None, :] + flow[:, 0], 0.0, W - 1.0)
    gy = jnp.clip(jnp.arange(H, dtype=jnp.float32)[None, :, None] + flow[:, 1], 0.0, H - 1.0)
    x0 = jnp.floor(gx).astype(jnp.int32)
    y0 = jnp.floor(gy).astype(jnp.int32)
    x1 = jnp.minimum(x0 + 1, W - 1)
    y1 = jnp.minimum(y0 + 1, H - 1)
    wx = gx - x0
    wy = gy - y0

    def gather(img, yi, xi):
        return jax.vmap(lambda im, y, x: im[:, y, x])(img, yi, xi)  # (B,C,H,W)

    v00 = gather(prev, y0, x0)
    v01 = gather(prev, y0, x1)
    v10 = gather(prev, y1, x0)
    v11 = gather(prev, y1, x1)
    wxb = wx[:, None]
    wyb = wy[:, None]
    warped = ((1 - wyb) * ((1 - wxb) * v00 + wxb * v01)
              + wyb * ((1 - wxb) * v10 + wxb * v11))
    fl = jnp.mean(jnp.abs(cur - warped))
    return rgb_weight * rgb + flow_weight * fl


if __name__ == "__main__":
    # Test 1: module-scale shapes (single output tile).
    k1, k2, k3 = jax.random.split(jax.random.PRNGKey(0), 3)
    B, C, H, W = 2, 4, 16, 16
    current = jax.random.normal(k1, (B, C, H, W), jnp.float32)
    previous = jax.random.normal(k2, (B, C, H, W), jnp.float32)
    # Placeholder "optical flow" (the reference module uses torch.randn);
    # generated deterministically here and fed to the kernel explicitly.
    flow = jax.random.normal(k3, (B, 2, H, W), jnp.float32)

    loss = jax.block_until_ready(temporal_consistency_loss(current, previous, flow))
    ref = _reference_loss(current, previous, flow)
    assert jnp.allclose(loss, ref, atol=1e-4, rtol=1e-4), (loss, ref)

    # Test 2: multi-tile output path (n_tp=4) with large flows that sample far
    # from each output pixel's own tile (review correctness concern).
    k4, k5, k6 = jax.random.split(jax.random.PRNGKey(1), 3)
    B2, C2, H2, W2 = 2, 3, 32, 32
    cur_b = jax.random.normal(k4, (B2, C2, H2, W2), jnp.float32)
    prev_b = jax.random.normal(k5, (B2, C2, H2, W2), jnp.float32)
    flow_b = 5.0 * jax.random.normal(k6, (B2, 2, H2, W2), jnp.float32)

    loss2 = jax.block_until_ready(
        temporal_consistency_loss(cur_b, prev_b, flow_b, tile_p=256))
    ref2 = _reference_loss(cur_b, prev_b, flow_b)
    assert jnp.allclose(loss2, ref2, atol=1e-4, rtol=1e-4), (loss2, ref2)

    print("KERNEL_OK")
</pallas_src>

<mosaic_0001>
module attributes {stable_mosaic.version = 11 : i64} {
  func.func @_warp_l1_kernel(%arg0: i32, %arg1: i32, %arg2: memref<1x4x256xf32, #tpu.memory_space<vmem>>, %arg3: memref<1x4x16x16xf32, #tpu.memory_space<vmem>>, %arg4: memref<1x2x256xf32, #tpu.memory_space<vmem>>, %arg5: memref<1x1x8x128xf32, #tpu.memory_space<vmem>>) attributes {dimension_semantics = [#tpu.dimension_semantics<parallel>, #tpu.dimension_semantics<parallel>], iteration_bounds = array<i64: 2, 1>, scalar_prefetch = 0 : i64, scratch_operands = 0 : i64, tpu.core_type = #tpu.core_type<tc>, window_params = [{transform_indices = @transform_0, window_bounds = array<i64: 1, 4, 256>}, {transform_indices = @transform_1, window_bounds = array<i64: 1, 4, 16, 16>}, {transform_indices = @transform_2, window_bounds = array<i64: 1, 2, 256>}, {transform_indices = @transform_3, window_bounds = array<i64: 1, 1, 8, 128>}]} {
    %c0 = arith.constant 0 : index
    %c0_0 = arith.constant 0 : index
    %c0_1 = arith.constant 0 : index
    %0 = vector.load %arg2[%c0, %c0_0, %c0_1] : memref<1x4x256xf32, #tpu.memory_space<vmem>>, vector<1x4x256xf32>
    %1 = vector.shape_cast %0 : vector<1x4x256xf32> to vector<4x256xf32>
    %c0_2 = arith.constant 0 : index
    %c0_3 = arith.constant 0 : index
    %c0_4 = arith.constant 0 : index
    %c0_5 = arith.constant 0 : index
    %2 = vector.load %arg3[%c0_2, %c0_3, %c0_4, %c0_5] : memref<1x4x16x16xf32, #tpu.memory_space<vmem>>, vector<1x4x16x16xf32>
    %3 = vector.shape_cast %2 : vector<1x4x16x16xf32> to vector<4x16x16xf32>
    %c0_6 = arith.constant 0 : index
    %c0_7 = arith.constant 0 : index
    %c0_8 = arith.constant 0 : index
    %4 = vector.load %arg4[%c0_6, %c0_7, %c0_8] : memref<1x2x256xf32, #tpu.memory_space<vmem>>, vector<1x1x256xf32>
    %5 = vector.shape_cast %4 : vector<1x1x256xf32> to vector<1x256xf32>
    %c0_9 = arith.constant 0 : index
    %c1 = arith.constant 1 : index
    %c0_10 = arith.constant 0 : index
    %6 = vector.load %arg4[%c0_9, %c1, %c0_10] : memref<1x2x256xf32, #tpu.memory_space<vmem>>, vector<1x1x256xf32>
    %7 = vector.shape_cast %6 : vector<1x1x256xf32> to vector<1x256xf32>
    %8 = math.floor %5 : vector<1x256xf32>
    %9 = math.floor %7 : vector<1x256xf32>
    %10 = arith.subf %5, %8 : vector<1x256xf32>
    %11 = arith.subf %7, %9 : vector<1x256xf32>
    %12 = arith.fptosi %8 : vector<1x256xf32> to vector<1x256xi32>
    %13 = arith.fptosi %9 : vector<1x256xf32> to vector<1x256xi32>
    %c1_i32 = arith.constant 1 : i32
    %14 = vector.broadcast %c1_i32 : i32 to vector<1x256xi32>
    %15 = arith.addi %12, %14 : vector<1x256xi32>
    %c15_i32 = arith.constant 15 : i32
    %16 = vector.broadcast %c15_i32 : i32 to vector<1x256xi32>
    %17 = arith.minsi %15, %16 : vector<1x256xi32>
    %c1_i32_11 = arith.constant 1 : i32
    %18 = vector.broadcast %c1_i32_11 : i32 to vector<1x256xi32>
    %19 = arith.addi %13, %18 : vector<1x256xi32>
    %c15_i32_12 = arith.constant 15 : i32
    %20 = vector.broadcast %c15_i32_12 : i32 to vector<1x256xi32>
    %21 = arith.minsi %19, %20 : vector<1x256xi32>
    %22 = tpu.iota {dimensions = array<i32: 0>} : vector<16x256xi32>
    %23 = vector.broadcast %12 : vector<1x256xi32> to vector<16x256xi32>
    %24 = arith.cmpi eq, %22, %23 : vector<16x256xi32>
    %cst = arith.constant 1.000000e+00 : f32
    %25 = vector.broadcast %cst : f32 to vector<1x256xf32>
    %26 = arith.subf %25, %10 : vector<1x256xf32>
    %cst_13 = arith.constant 0.000000e+00 : f32
    %27 = vector.shape_cast %26 : vector<1x256xf32> to vector<1x256xf32>
    %28 = vector.broadcast %27 : vector<1x256xf32> to vector<16x256xf32>
    %29 = vector.broadcast %cst_13 : f32 to vector<16x256xf32>
    %30 = arith.select %24, %28, %29 : vector<16x256xi1>, vector<16x256xf32>
    %31 = vector.broadcast %17 : vector<1x256xi32> to vector<16x256xi32>
    %32 = arith.cmpi eq, %22, %31 : vector<16x256xi32>
    %cst_14 = arith.constant 0.000000e+00 : f32
    %33 = vector.shape_cast %10 : vector<1x256xf32> to vector<1x256xf32>
    %34 = vector.broadcast %33 : vector<1x256xf32> to vector<16x256xf32>
    %35 = vector.broadcast %cst_14 : f32 to vector<16x256xf32>
    %36 = arith.select %32, %34, %35 : vector<16x256xi1>, vector<16x256xf32>
    %37 = arith.addf %30, %36 : vector<16x256xf32>
    %38 = tpu.iota {dimensions = array<i32: 0>} : vector<16x256xi32>
    %39 = vector.broadcast %13 : vector<1x256xi32> to vector<16x256xi32>
    %40 = arith.cmpi eq, %38, %39 : vector<16x256xi32>
    %cst_15 = arith.constant 1.000000e+00 : f32
    %41 = vector.broadcast %cst_15 : f32 to vector<1x256xf32>
    %42 = arith.subf %41, %11 : vector<1x256xf32>
    %cst_16 = arith.constant 0.000000e+00 : f32
    %43 = vector.shape_cast %42 : vector<1x256xf32> to vector<1x256xf32>
    %44 = vector.broadcast %43 : vector<1x256xf32> to vector<16x256xf32>
    %45 = vector.broadcast %cst_16 : f32 to vector<16x256xf32>
    %46 = arith.select %40, %44, %45 : vector<16x256xi1>, vector<16x256xf32>
    %47 = vector.broadcast %21 : vector<1x256xi32> to vector<16x256xi32>
    %48 = arith.cmpi eq, %38, %47 : vector<16x256xi32>
    %cst_17 = arith.constant 0.000000e+00 : f32
    %49 = vector.shape_cast %11 : vector<1x256xf32> to vector<1x256xf32>
    %50 = vector.broadcast %49 : vector<1x256xf32> to vector<16x256xf32>
    %51 = vector.broadcast %cst_17 : f32 to vector<16x256xf32>
    %52 = arith.select %48, %50, %51 : vector<16x256xi1>, vector<16x256xf32>
    %53 = arith.addf %46, %52 : vector<16x256xf32>
    %54 = vector.shape_cast %3 : vector<4x16x16xf32> to vector<64x16xf32>
    %cst_18 = arith.constant dense<0.000000e+00> : vector<64x256xf32>
    %55 = tpu.matmul %54, %37, %cst_18 {dimension_numbers = #tpu.dot_dimension_numbers<[1], [0], [0], [1], [0, 0, 1, 1], [], []>} : vector<64x16xf32>, vector<16x256xf32>, vector<64x256xf32> -> vector<64x256xf32>
    %56 = vector.extract_strided_slice %55 {offsets = [0, 0], sizes = [16, 256], strides = [1, 1]} : vector<64x256xf32> to vector<16x256xf32>
    %57 = arith.mulf %56, %53 : vector<16x256xf32>
    %cst_19 = arith.constant dense<0.000000e+00> : vector<256xf32>
    %58 = vector.multi_reduction <add>, %57, %cst_19 [0] : vector<16x256xf32> to vector<256xf32>
    %59 = vector.shape_cast %58 : vector<256xf32> to vector<1x256xf32>
    %60 = vector.extract_strided_slice %55 {offsets = [16, 0], sizes = [16, 256], strides = [1, 1]} : vector<64x256xf32> to vector<16x256xf32>
    %61 = arith.mulf %60, %53 : vector<16x256xf32>
    %cst_20 = arith.constant dense<0.000000e+00> : vector<256xf32>
    %62 = vector.multi_reduction <add>, %61, %cst_20 [0] : vector<16x256xf32> to vector<256xf32>
    %63 = vector.shape_cast %62 : vector<256xf32> to vector<1x256xf32>
    %64 = vector.extract_strided_slice %55 {offsets = [32, 0], sizes = [16, 256], strides = [1, 1]} : vector<64x256xf32> to vector<16x256xf32>
    %65 = arith.mulf %64, %53 : vector<16x256xf32>
    %cst_21 = arith.constant dense<0.000000e+00> : vector<256xf32>
    %66 = vector.multi_reduction <add>, %65, %cst_21 [0] : vector<16x256xf32> to vector<256xf32>
    %67 = vector.shape_cast %66 : vector<256xf32> to vector<1x256xf32>
    %68 = vector.extract_strided_slice %55 {offsets = [48, 0], sizes = [16, 256], strides = [1, 1]} : vector<64x256xf32> to vector<16x256xf32>
    %69 = arith.mulf %68, %53 : vector<16x256xf32>
    %cst_22 = arith.constant dense<0.000000e+00> : vector<256xf32>
    %70 = vector.multi_reduction <add>, %69, %cst_22 [0] : vector<16x256xf32> to vector<256xf32>
    %71 = vector.shape_cast %70 : vector<256xf32> to vector<1x256xf32>
    %72 = tpu.concatenate %59, %63, %67, %71 in 0 : vector<1x256xf32>, vector<1x256xf32>, vector<1x256xf32>, vector<1x256xf32> -> vector<4x256xf32>
    %73 = arith.subf %1, %72 : vector<4x256xf32>
    %74 = math.absf %73 : vector<4x256xf32>
    %75 = vector.shape_cast %74 : vector<4x256xf32> to vector<1x4x256xf32>
    %cst_23 = arith.constant dense<0.000000e+00> : vector<1xf32>
    %76 = vector.multi_reduction <add>, %75, %cst_23 [1, 2] : vector<1x4x256xf32> to vector<1xf32>
    %77 = vector.shape_cast %76 : vector<1xf32> to vector<1x1x1xf32>
    %78 = vector.extract %77[0, 0, 0] : f32 from vector<1x1x1xf32>
    %79 = vector.broadcast %78 : f32 to vector<1x1x8x128xf32>
    %c0_24 = arith.constant 0 : index
    %c0_25 = arith.constant 0 : index
    %c0_26 = arith.constant 0 : index
    %c0_27 = arith.constant 0 : index
    %80 = vector.load %arg5[%c0_24, %c0_25, %c0_26, %c0_27] : memref<1x1x8x128xf32, #tpu.memory_space<vmem>>, vector<1x1x8x128xf32>
    tpu.vector_store %arg5[%c0_24, %c0_25, %c0_26, %c0_27], %79 {strides = array<i32>} : memref<1x1x8x128xf32, #tpu.memory_space<vmem>>, vector<1x1x8x128xf32>,
    return
  }
  func.func @transform_0(%arg0: i32, %arg1: i32) -> (i32, i32, i32) {
    %c0_i32 = arith.constant 0 : i32
    %c0_i32_0 = arith.constant 0 : i32
    return %arg0, %c0_i32, %arg1 : i32, i32, i32
  }
  func.func @transform_1(%arg0: i32, %arg1: i32) -> (i32, i32, i32, i32) {
    %c0_i32 = arith.constant 0 : i32
    %c0_i32_0 = arith.constant 0 : i32
    %c0_i32_1 = arith.constant 0 : i32
    %c0_i32_2 = arith.constant 0 : i32
    return %arg0, %c0_i32, %c0_i32_0, %c0_i32_1 : i32, i32, i32, i32
  }
  func.func @transform_2(%arg0: i32, %arg1: i32) -> (i32, i32, i32) {
    %c0_i32 = arith.constant 0 : i32
    %c0_i32_0 = arith.constant 0 : i32
    return %arg0, %c0_i32, %arg1 : i32, i32, i32
  }
  func.func @transform_3(%arg0: i32, %arg1: i32) -> (i32, i32, i32, i32) {
    %c0_i32 = arith.constant 0 : i32
    %c0_i32_0 = arith.constant 0 : i32
    %c0_i32_1 = arith.constant 0 : i32
    return %arg0, %arg1, %c0_i32, %c0_i32_0 : i32, i32, i32, i32
  }
}

</mosaic_0001>

<llo_original>
// kernel: tpu_custom_call.1
$region0: #{tpu_custom_call.1}
  #allocation0 [shape = 'u32[]', space=smem, size = 0x4, offset = 0x4, fixed_abs, tag = 'smem constant byte address 0x4 - core index']
  #allocation1 [shape = 'u32[144,128]{1,0:T(1,128)}', space=vmem, size = 0x12000, scoped, tag = 'internal scratch']
  %s0 = inlined_call_operand.hbm [shape: f32[2,4,256], index: 0, kind: input, shape index: {}]
  %s1 = inlined_call_operand.hbm [shape: f32[2,4,16,16], index: 1, kind: input, shape index: {}]
  %s2 = inlined_call_operand.hbm [shape: f32[2,2,256], index: 2, kind: input, shape index: {}]
  %s3 = inlined_call_operand.hbm [shape: f32[2,1,8,128], index: 3, kind: output, shape index: {}]
  %s4 = sld [smem:[#allocation0]]
  $region57: #{tpu_custom_call.1} parent=0
    _
  %s6 = ssub.s32 1, %s4
  %s7 = scalar_select 0, %s6, %s4
  $region1: #{tpu_custom_call.1} parent=0
    #allocation2 [shape = 'u8[8192]{0}', space=vmem, size = 0x2000, scoped, tag = 'input window, operand 0']
    #allocation3 [shape = 's32[2]{0}', space=sflag, size = 0x8, scoped, tag = 'scoped memory for tpu_custom_call.1']
    #allocation4 [shape = 's32[2]{0}', space=sflag, size = 0x8, scoped, tag = 'scoped memory for tpu_custom_call.1']
    #allocation5 [shape = 'u8[65536]{0}', space=vmem, size = 0x10000, scoped, tag = 'input window, operand 1']
    #allocation6 [shape = 's32[2]{0}', space=sflag, size = 0x8, scoped, tag = 'scoped memory for tpu_custom_call.1']
    #allocation7 [shape = 'u8[4096]{0}', space=vmem, size = 0x1000, scoped, tag = 'input window, operand 2']
    #allocation8 [shape = 'u8[8192]{0}', space=vmem, size = 0x2000, scoped, tag = 'output window, operand 0']
    %8 = vsyncpa [#allocation3], 0
    %s9 = scalar_lea.sflag [#allocation3], 1
    %10 = vsyncpa %s9, 0
    %11 = vsyncpa [#allocation6], 0
    %s12 = scalar_lea.sflag [#allocation6], 1
    %13 = vsyncpa %s12, 0
    %14 = vsyncpa [#allocation4], 0
    %s15 = scalar_lea.sflag [#allocation4], 1
    %16 = vsyncpa %s15, 0
    loop: start=0, step=1, limit=4
    $region2: #{tpu_custom_call.1} parent=1 // loop_pre_header
      _
    $region3: #{tpu_custom_call.1} parent=1 // loop_header
      %s18 = sphi 0, %s22
      %p19 = scmp.ge.s32.totalorder %s18, 4
      %s25 = sphi 0, %s37
      %s26 = sphi 0, %s33
      %s27 = sphi 0, %s25
      %s28 = sphi 0, %s26
      %s29 = sphi 0, %s27
      %s30 = sphi 0, %s28
      %s42 = sphi 0, %s44
      %s45 = sphi 0, %s42
      %s46 = sphi 0, %s45
      %s62 = sphi 0, %s46
      %s68 = sphi 0, %s70
      %s71 = sphi 0, %s68
      %s72 = sphi 0, %s71
      %s88 = sphi 0, %s72
      %s96 = sphi 0, %s98
      %s99 = sphi 0, %s96
      %s100 = sphi 0, %s99
      %s116 = sphi 0, %s100
      %s124 = sphi 0, %s126
      %s127 = sphi 0, %s124
      %s128 = sphi 0, %s127
      %s144 = sphi 0, %s128
    $region4: #{tpu_custom_call.1} parent=1 // loop_header_branch
      %21 = sbr.rel (%p19) target = $region8
    $region5: #{tpu_custom_call.1} parent=1 // loop_body
      %s23 = ssub.s32 %s18, 1
      %s24 = ssub.s32 %s18, 2
      %s31 = sadd.s32 1, %s26
      %p32 = scmp.ge.s32.totalorder %s31, 1
      %s33 = scalar_select %p32, 0, %s31
      %s34 = sadd.s32 1, %s25
      %s35 = scalar_select %p32, %s34, %s25
      %p36 = scmp.ge.s32.totalorder %s35, 2
      %s37 = scalar_select %p36, 0, %s35
      %s38 = ssub.s32 %s25, %s37
      %s39 = ssub.s32 %s26, %s33
      %s40 = sor.u32 %s38, %s39
      %p41 = scmp.eq.s32.totalorder %s40, 0
      %s43 = sadd.s32 %s42, 1
      %s44 = scalar_select %p41, %s42, %s43
      %p47 = pneg %p41
      %p48 = scmp.eq.s32.totalorder %s18, 1
      %p49 = por %p47, %p48
      %p50 = scmp.ne.s32.totalorder %s42, %s45
      %p51 = scmp.eq.s32.totalorder %s18, 0
      %p52 = por %p50, %p51
      %p53 = scmp.ne.s32.totalorder %s42, %s45
      %p54 = scmp.eq.s32.totalorder %s23, 1
      %p55 = por %p53, %p54
      %p56 = scmp.ne.s32.totalorder %s45, %s46
      %p57 = scmp.eq.s32.totalorder %s23, 0
      %p58 = por %p56, %p57
      %p59 = scmp.ne.s32.totalorder %s45, %s46
      %p60 = scmp.eq.s32.totalorder %s24, 1
      %p61 = por %p59, %p60
      %p63 = scmp.ne.s32.totalorder %s46, %s62
      %p64 = scmp.eq.s32.totalorder %s24, 0
      %p65 = por %p63, %p64
      %s66 = ssub.s32 %s25, %s37
      %p67 = scmp.eq.s32.totalorder %s66, 0
      %s69 = sadd.s32 %s68, 1
      %s70 = scalar_select %p67, %s68, %s69
      %p73 = pneg %p67
      %p74 = scmp.eq.s32.totalorder %s18, 1
      %p75 = por %p73, %p74
      %p76 = scmp.ne.s32.totalorder %s68, %s71
      %p77 = scmp.eq.s32.totalorder %s18, 0
      %p78 = por %p76, %p77
      %p79 = scmp.ne.s32.totalorder %s68, %s71
      %p80 = scmp.eq.s32.totalorder %s23, 1
      %p81 = por %p79, %p80
      %p82 = scmp.ne.s32.totalorder %s71, %s72
      %p83 = scmp.eq.s32.totalorder %s23, 0
      %p84 = por %p82, %p83
      %p85 = scmp.ne.s32.totalorder %s71, %s72
      %p86 = scmp.eq.s32.totalorder %s24, 1
      %p87 = por %p85, %p86
      %p89 = scmp.ne.s32.totalorder %s72, %s88
      %p90 = scmp.eq.s32.totalorder %s24, 0
      %p91 = por %p89, %p90
      %s92 = ssub.s32 %s25, %s37
      %s93 = ssub.s32 %s26, %s33
      %s94 = sor.u32 %s92, %s93
      %p95 = scmp.eq.s32.totalorder %s94, 0
      %s97 = sadd.s32 %s96, 1
      %s98 = scalar_select %p95, %s96, %s97
      %p101 = pneg %p95
      %p102 = scmp.eq.s32.totalorder %s18, 1
      %p103 = por %p101, %p102
      %p104 = scmp.ne.s32.totalorder %s96, %s99
      %p105 = scmp.eq.s32.totalorder %s18, 0
      %p106 = por %p104, %p105
      %p107 = scmp.ne.s32.totalorder %s96, %s99
      %p108 = scmp.eq.s32.totalorder %s23, 1
      %p109 = por %p107, %p108
      %p110 = scmp.ne.s32.totalorder %s99, %s100
      %p111 = scmp.eq.s32.totalorder %s23, 0
      %p112 = por %p110, %p111
      %p113 = scmp.ne.s32.totalorder %s99, %s100
      %p114 = scmp.eq.s32.totalorder %s24, 1
      %p115 = por %p113, %p114
      %p117 = scmp.ne.s32.totalorder %s100, %s116
      %p118 = scmp.eq.s32.totalorder %s24, 0
      %p119 = por %p117, %p118
      %s120 = ssub.s32 %s25, %s37
      %s121 = ssub.s32 %s26, %s33
      %s122 = sor.u32 %s120, %s121
      %p123 = scmp.eq.s32.totalorder %s122, 0
      %s125 = sadd.s32 %s124, 1
      %s126 = scalar_select %p123, %s124, %s125
      %p129 = pneg %p123
      %p130 = scmp.eq.s32.totalorder %s18, 1
      %p131 = por %p129, %p130
      %p132 = scmp.ne.s32.totalorder %s124, %s127
      %p133 = scmp.eq.s32.totalorder %s18, 0
      %p134 = por %p132, %p133
      %p135 = scmp.ne.s32.totalorder %s124, %s127
      %p136 = scmp.eq.s32.totalorder %s23, 1
      %p137 = por %p135, %p136
      %p138 = scmp.ne.s32.totalorder %s127, %s128
      %p139 = scmp.eq.s32.totalorder %s23, 0
      %p140 = por %p138, %p139
      %p141 = scmp.ne.s32.totalorder %s127, %s128
      %p142 = scmp.eq.s32.totalorder %s24, 1
      %p143 = por %p141, %p142
      %p145 = scmp.ne.s32.totalorder %s128, %s144
      %p146 = scmp.eq.s32.totalorder %s24, 0
      %p147 = por %p145, %p146
      %p148 = scmp.le.s32.totalorder 1, %s18
      %p149 = scmp.lt.s32.totalorder %s18, 3
      %p150 = pnand %p148, %p149
      %p151 = pneg %p150
      // Predicated region
      $region9: #{tpu_custom_call.1} parent=5 // pred_check
        _
      $region10: #{tpu_custom_call.1} parent=5 // pred_check_branch
        %153 = sbr.rel (%p150) target = $region12
      $region11: #{tpu_custom_call.1} parent=5 // pred_region
        %s154 = ssub.s32 %s18, 1
      $region12: #{tpu_custom_call.1} parent=5 // pred_fallthru
        _
      %p155 = scmp.lt.s32.totalorder %s18, 2
      // Predicated region
      $region13: #{tpu_custom_call.1} parent=5 // pred_check
        %p156 = pneg %p155
      $region14: #{tpu_custom_call.1} parent=5 // pred_check_branch
        %158 = sbr.rel (%p156) target = $region16
      $region15: #{tpu_custom_call.1} parent=5 // pred_region
        // Predicated region
        $region17: #{tpu_custom_call.1} parent=15 // pred_check
          %p159 = pneg %p52
        $region18: #{tpu_custom_call.1} parent=15 // pred_check_branch
          %161 = sbr.rel (%p159) target = $region20
        $region19: #{tpu_custom_call.1} parent=15 // pred_region
          %s162 = sand.u32 %s42, 1
          %s163 = scalar_lea.sflag [#allocation3], %s162
          %s164 = sand.u32 %s42, 1
          %s165 = smul.addr %s164, 8
          %s166 = scalar_lea.vmem [#allocation2], %s165
          %s167 = smul.u32 2, %s26
          %s169 = ssub.s32 128, 128
          %170 = vsyncadd %s163, %s169
          %s171 = smul.addr %s25, 2
          %s172 = sadd.s32 %s167, %s171
          %s173 = smul.addr %s172, 64
          %s174 = scalar_lea.hbm %s0, %s173
          %s176 = sshll.u32 %s166, 4
          %s177 = int_to_ptr.vmem [resolvable:$true] %s176
          %179 = dma.hbm_to_vmem [thread:$0]  %s174, 128, %s177, %s163
        $region20: #{tpu_custom_call.1} parent=15 // pred_fallthru
          _
        // Predicated region
        $region21: #{tpu_custom_call.1} parent=15 // pred_check
          %p180 = pneg %p78
        $region22: #{tpu_custom_call.1} parent=15 // pred_check_branch
          %182 = sbr.rel (%p180) target = $region24
        $region23: #{tpu_custom_call.1} parent=15 // pred_region
          %s183 = sand.u32 %s18, 1
          %s184 = scalar_lea.sflag [#allocation6], %s183
          %s185 = sand.u32 %s68, 1
          %s186 = smul.addr %s185, 64
          %s187 = scalar_lea.vmem [#allocation5], %s186
          %s189 = ssub.s32 1024, 1024
          %190 = vsyncadd %s184, %s189
          %s191 = smul.addr %s25, 8
          %s192 = smul.addr %s191, 128
          %s193 = scalar_lea.hbm %s1, %s192
          %s194 = sshll.u32 %s187, 4
          %s195 = int_to_ptr.vmem [resolvable:$true] %s194
          %200 = dma.hbm_to_vmem [thread:$0]  %s193, 1024, %s195, %s184, 128, 128, 8
        $region24: #{tpu_custom_call.1} parent=15 // pred_fallthru
          _
        // Predicated region
        $region25: #{tpu_custom_call.1} parent=15 // pred_check
          %p201 = pneg %p106
        $region26: #{tpu_custom_call.1} parent=15 // pred_check_branch
          %203 = sbr.rel (%p201) target = $region28
        $region27: #{tpu_custom_call.1} parent=15 // pred_region
          %s204 = sand.u32 %s18, 1
          %s205 = scalar_lea.sflag [#allocation6], %s204
          %s206 = sand.u32 %s96, 1
          %s207 = smul.addr %s206, 4
          %s208 = scalar_lea.vmem [#allocation7], %s207
          %s209 = smul.u32 2, %s26
          %s211 = ssub.s32 64, 64
          %212 = vsyncadd %s205, %s211
          %s213 = smul.addr %s25, 2
          %s214 = sadd.s32 %s209, %s213
          %s215 = smul.addr %s214, 32
          %s216 = scalar_lea.hbm %s2, %s215
          %s218 = sshll.u32 %s208, 4
          %s219 = int_to_ptr.vmem [resolvable:$true] %s218
          %221 = dma.hbm_to_vmem [thread:$0]  %s216, 64, %s219, %s205
        $region28: #{tpu_custom_call.1} parent=15 // pred_fallthru
          _
      $region16: #{tpu_custom_call.1} parent=5 // pred_fallthru
        _
      %p222 = scmp.le.s32.totalorder 1, %s18
      %p223 = scmp.lt.s32.totalorder %s18, 3
      %p224 = pnand %p222, %p223
      %p225 = pneg %p224
      // Predicated region
      $region29: #{tpu_custom_call.1} parent=5 // pred_check
        _
      $region30: #{tpu_custom_call.1} parent=5 // pred_check_branch
        %227 = sbr.rel (%p224) target = $region32
      $region31: #{tpu_custom_call.1} parent=5 // pred_region
        %s228 = ssub.s32 %s18, 1
        %s229 = sand.u32 %s45, 1
        %s230 = scalar_lea.sflag [#allocation3], %s229
        %s231 = sand.u32 %s45, 1
        %s232 = smul.addr %s231, 8
        %s233 = scalar_lea.vmem [#allocation2], %s232
        // Predicated region
        $region33: #{tpu_custom_call.1} parent=31 // pred_check
          %p234 = pneg %p58
        $region34: #{tpu_custom_call.1} parent=31 // pred_check_branch
          %236 = sbr.rel (%p234) target = $region36
        $region35: #{tpu_custom_call.1} parent=31 // pred_region
          %237 = dma.done %s230, 128
        $region36: #{tpu_custom_call.1} parent=31 // pred_fallthru
          _
        %s238 = sand.u32 %s23, 1
        %s239 = scalar_lea.sflag [#allocation6], %s238
        %s240 = sand.u32 %s71, 1
        %s241 = smul.addr %s240, 64
        %s242 = scalar_lea.vmem [#allocation5], %s241
        // Predicated region
        $region37: #{tpu_custom_call.1} parent=31 // pred_check
          %p243 = pneg %p84
        $region38: #{tpu_custom_call.1} parent=31 // pred_check_branch
          %245 = sbr.rel (%p243) target = $region40
        $region39: #{tpu_custom_call.1} parent=31 // pred_region
          %246 = dma.done %s239, 1024
        $region40: #{tpu_custom_call.1} parent=31 // pred_fallthru
          _
        %s247 = sand.u32 %s23, 1
        %s248 = scalar_lea.sflag [#allocation6], %s247
        %s249 = sand.u32 %s99, 1
        %s250 = smul.addr %s249, 4
        %s251 = scalar_lea.vmem [#allocation7], %s250
        // Predicated region
        $region41: #{tpu_custom_call.1} parent=31 // pred_check
          %p252 = pneg %p112
        $region42: #{tpu_custom_call.1} parent=31 // pred_check_branch
          %254 = sbr.rel (%p252) target = $region44
        $region43: #{tpu_custom_call.1} parent=31 // pred_region
          %255 = dma.done %s248, 64
        $region44: #{tpu_custom_call.1} parent=31 // pred_fallthru
          _
        %s256 = sand.u32 %s45, 1
        %s257 = scalar_lea.sflag [#allocation3], %s256
        %s258 = sand.u32 %s45, 1
        %s259 = smul.addr %s258, 8
        %s260 = scalar_lea.vmem [#allocation2], %s259
        %p261 = pneg %p58
        %p262 = pneg %p55
        %s263 = sand.u32 %s23, 1
        %s264 = scalar_lea.sflag [#allocation6], %s263
        %s265 = sand.u32 %s71, 1
        %s266 = smul.addr %s265, 64
        %s267 = scalar_lea.vmem [#allocation5], %s266
        %p268 = pneg %p84
        %p269 = pneg %p81
        %s270 = sand.u32 %s23, 1
        %s271 = scalar_lea.sflag [#allocation6], %s270
        %s272 = sand.u32 %s99, 1
        %s273 = smul.addr %s272, 4
        %s274 = scalar_lea.vmem [#allocation7], %s273
        %p275 = pneg %p112
        %p276 = pneg %p109
        %p277 = pneg %p140
        %p278 = pneg %p137
        %s279 = sand.u32 %s127, 1
        %s280 = scalar_lea.sflag [#allocation4], %s279
        %s281 = sand.u32 %s127, 1
        %s282 = smul.addr %s281, 8
        %s283 = scalar_lea.vmem [#allocation8], %s282
        %s284 = smul.u32 2, %s28
        %s285 = smul.u32 2, %s28
        %v286 = vld [vmem:[%s233] sm:$0xff]
        %v287 = vld [vmem:[%s242] sm:$0xff]
        %v288 = vld [vmem:[%s242 + $0x8] sm:$0xff]
        %v289 = vld [vmem:[%s242 + $0x10] sm:$0xff]
        %v290 = vld [vmem:[%s242 + $0x18] sm:$0xff]
        %v291 = vld [vmem:[%s242 + $0x20] sm:$0xff]
        %v292 = vld [vmem:[%s242 + $0x28] sm:$0xff]
        %v293 = vld [vmem:[%s242 + $0x30] sm:$0xff]
        %v294 = vld [vmem:[%s242 + $0x38] sm:$0xff]
        %v295 = vld [vmem:[%s251] ss:$2 sm:$0x3]
        %s296 = scalar_lea.vmem %s251, 1 [#allocation7]
        %v297 = vld [vmem:[%s296] ss:$2 sm:$0x3]
        %v298 = vfloor.f32 %v295
        %v299 = vfloor.f32 %v297
        %v300 = vsub.f32 %v295, %v298
        %v301 = vsub.f32 %v297, %v299
        %v302 = vcvt.f32.s32.to.zero.pseudo %v298
        %v303 = vcvt.f32.s32.to.zero.pseudo %v299
        %v304 = vadd.s32 %v302, 1
        %vm305 = vcmp.lt.s32.totalorder %v304, 15
        %v306 = vsel %vm305, %v304, 15
        %v307 = vadd.s32 %v303, 1
        %vm308 = vcmp.lt.s32.totalorder %v307, 15
        %v309 = vsel %vm308, %v307, 15
        %v310 = vlaneseq
        %v311 = vshrl.u32 %v310, 7
        %v312 = vadd.s32 %v311, 8
        %v313 = vlaneseq
        %v314 = vshrl.u32 %v313, 7
        %v315 = vsub.s32 0, %v314
        %v316 = vrot.slane %v302, %v315
        %v317 = vlaneseq
        %v318 = vshrl.u32 %v317, 7
        %v319 = vsub.s32 1, %v318
        %v320 = vrot.slane %v302, %v319
        %vm321 = vcmp.eq.s32.totalorder %v311, %v316
        %vm322 = vcmp.eq.s32.totalorder %v311, %v320
        %vm323 = vcmp.eq.s32.totalorder %v312, %v316
        %vm324 = vcmp.eq.s32.totalorder %v312, %v320
        %v325 = vsub.f32 1.0, %v300
        %v327 = vlaneseq
        %v328 = vshrl.u32 %v327, 7
        %v329 = vsub.s32 0, %v328
        %v330 = vrot.slane %v325, %v329
        %v331 = vlaneseq
        %v332 = vshrl.u32 %v331, 7
        %v333 = vsub.s32 1, %v332
        %v334 = vrot.slane %v325, %v333
        %v337 = vsel %vm321, %v330, 0.0
        %v338 = vsel %vm322, %v334, 0.0
        %v339 = vsel %vm323, %v330, 0.0
        %v340 = vsel %vm324, %v334, 0.0
        %v341 = vlaneseq
        %v342 = vshrl.u32 %v341, 7
        %v343 = vsub.s32 0, %v342
        %v344 = vrot.slane %v306, %v343
        %v345 = vlaneseq
        %v346 = vshrl.u32 %v345, 7
        %v347 = vsub.s32 1, %v346
        %v348 = vrot.slane %v306, %v347
        %vm349 = vcmp.eq.s32.totalorder %v311, %v344
        %vm350 = vcmp.eq.s32.totalorder %v311, %v348
        %vm351 = vcmp.eq.s32.totalorder %v312, %v344
        %vm352 = vcmp.eq.s32.totalorder %v312, %v348
        %v354 = vlaneseq
        %v355 = vshrl.u32 %v354, 7
        %v356 = vsub.s32 0, %v355
        %v357 = vrot.slane %v300, %v356
        %v358 = vlaneseq
        %v359 = vshrl.u32 %v358, 7
        %v360 = vsub.s32 1, %v359
        %v361 = vrot.slane %v300, %v360
        %v364 = vsel %vm349, %v357, 0.0
        %v365 = vsel %vm350, %v361, 0.0
        %v366 = vsel %vm351, %v357, 0.0
        %v367 = vsel %vm352, %v361, 0.0
        %v368 = vadd.f32 %v337, %v364
        %v369 = vadd.f32 %v338, %v365
        %v370 = vadd.f32 %v339, %v366
        %v371 = vadd.f32 %v340, %v367
        %v372 = vlaneseq
        %v373 = vshrl.u32 %v372, 7
        %v374 = vsub.s32 0, %v373
        %v375 = vrot.slane %v303, %v374
        %v376 = vlaneseq
        %v377 = vshrl.u32 %v376, 7
        %v378 = vsub.s32 1, %v377
        %v379 = vrot.slane %v303, %v378
        %vm380 = vcmp.eq.s32.totalorder %v311, %v375
        %vm381 = vcmp.eq.s32.totalorder %v311, %v379
        %vm382 = vcmp.eq.s32.totalorder %v312, %v375
        %vm383 = vcmp.eq.s32.totalorder %v312, %v379
        %v384 = vsub.f32 1.0, %v301
        %v386 = vlaneseq
        %v387 = vshrl.u32 %v386, 7
        %v388 = vsub.s32 0, %v387
        %v389 = vrot.slane %v384, %v388
        %v390 = vlaneseq
        %v391 = vshrl.u32 %v390, 7
        %v392 = vsub.s32 1, %v391
        %v393 = vrot.slane %v384, %v392
        %v396 = vsel %vm380, %v389, 0.0
        %v397 = vsel %vm381, %v393, 0.0
        %v398 = vsel %vm382, %v389, 0.0
        %v399 = vsel %vm383, %v393, 0.0
        %v400 = vlaneseq
        %v401 = vshrl.u32 %v400, 7
        %v402 = vsub.s32 0, %v401
        %v403 = vrot.slane %v309, %v402
        %v404 = vlaneseq
        %v405 = vshrl.u32 %v404, 7
        %v406 = vsub.s32 1, %v405
        %v407 = vrot.slane %v309, %v406
        %vm408 = vcmp.eq.s32.totalorder %v311, %v403
        %vm409 = vcmp.eq.s32.totalorder %v311, %v407
        %vm410 = vcmp.eq.s32.totalorder %v312, %v403
        %vm411 = vcmp.eq.s32.totalorder %v312, %v407
        %v413 = vlaneseq
        %v414 = vshrl.u32 %v413, 7
        %v415 = vsub.s32 0, %v414
        %v416 = vrot.slane %v301, %v415
        %v417 = vlaneseq
        %v418 = vshrl.u32 %v417, 7
        %v419 = vsub.s32 1, %v418
        %v420 = vrot.slane %v301, %v419
        %v423 = vsel %vm408, %v416, 0.0
        %v424 = vsel %vm409, %v420, 0.0
        %v425 = vsel %vm410, %v416, 0.0
        %v426 = vsel %vm411, %v420, 0.0
        %v427 = vadd.f32 %v396, %v423
        %v428 = vadd.f32 %v397, %v424
        %v429 = vadd.f32 %v398, %v425
        %v430 = vadd.f32 %v399, %v426
        %vm431 = vcmask 130048
        %v433 = vsel %vm431, %v287, 0
        %v436 = vsel %vm431, %v288, 0
        %v439 = vsel %vm431, %v289, 0
        %v442 = vsel %vm431, %v290, 0
        %v445 = vsel %vm431, %v291, 0
        %v448 = vsel %vm431, %v292, 0
        %v451 = vsel %vm431, %v293, 0
        %v454 = vsel %vm431, %v294, 0
        %456 = vmatprep.subr.mxu0 %v369
        %457 = vmatpush1.msra.mxu0 %v368
        %458 = vmatprep.subr.mxu0 %v371
        %459 = vmatpush1.msra.mxu0 %v370
        %460 = vmatprep.subr.mxu0 0.0
        %461 = vmatpush1.msra.mxu0 0.0
        %462 = vmatprep.subr.mxu0 0.0
        %463 = vmatpush1.msra.mxu0 0.0
        %464 = vmatprep.subr.mxu0 0.0
        %465 = vmatpush1.msra.mxu0 0.0
        %466 = vmatprep.subr.mxu0 0.0
        %467 = vmatpush1.msra.mxu0 0.0
        %468 = vmatprep.subr.mxu0 0.0
        %469 = vmatpush1.msra.mxu0 0.0
        %470 = vmatprep.subr.mxu0 0.0
        %471 = vmatpush1.msra.mxu0 0.0
        %472 = vmatprep.subr.mxu0 0.0
        %473 = vmatpush1.msra.mxu0 0.0
        %474 = vmatprep.subr.mxu0 0.0
        %475 = vmatpush1.msra.mxu0 0.0
        %476 = vmatprep.subr.mxu0 0.0
        %477 = vmatpush1.msra.mxu0 0.0
        %478 = vmatprep.subr.mxu0 0.0
        %479 = vmatpush1.msra.mxu0 0.0
        %480 = vmatprep.subr.mxu0 0.0
        %481 = vmatpush1.msra.mxu0 0.0
        %482 = vmatprep.subr.mxu0 0.0
        %483 = vmatpush1.msra.mxu0 0.0
        %484 = vmatprep.subr.mxu0 0.0
        %485 = vmatpush1.msra.mxu0 0.0
        %486 = vmatprep.subr.mxu0 0.0
        %487 = vmatpush1.msra.mxu0 0.0
        %488 = vmatprep.subr.mxu0 0.0
        %489 = vmatpush1.msra.mxu0 0.0
        %490 = vmatprep.subr.mxu0 0.0
        %491 = vmatpush1.msra.mxu0 0.0
        %492 = vmatprep.subr.mxu0 0.0
        %493 = vmatpush1.msra.mxu0 0.0
        %494 = vmatprep.subr.mxu0 0.0
        %495 = vmatpush1.msra.mxu0 0.0
        %496 = vmatprep.subr.mxu0 0.0
        %497 = vmatpush1.msra.mxu0 0.0
        %498 = vmatprep.subr.mxu0 0.0
        %499 = vmatpush1.msra.mxu0 0.0
        %500 = vmatprep.subr.mxu0 0.0
        %501 = vmatpush1.msra.mxu0 0.0
        %502 = vmatprep.subr.mxu0 0.0
        %503 = vmatpush1.msra.mxu0 0.0
        %504 = vmatprep.subr.mxu0 0.0
        %505 = vmatpush1.msra.mxu0 0.0
        %506 = vmatprep.subr.mxu0 0.0
        %507 = vmatpush1.msra.mxu0 0.0
        %508 = vmatprep.subr.mxu0 0.0
        %509 = vmatpush1.msra.mxu0 0.0
        %510 = vmatprep.subr.mxu0 0.0
        %511 = vmatpush1.msra.mxu0 0.0
        %512 = vmatprep.subr.mxu0 0.0
        %513 = vmatpush1.msra.mxu0 0.0
        %514 = vmatprep.subr.mxu0 0.0
        %515 = vmatpush1.msra.mxu0 0.0
        %516 = vmatprep.subr.mxu0 0.0
        %517 = vmatpush1.msra.mxu0 0.0
        %518 = vmatprep.subr.mxu0 0.0
        %519 = vmatpush1.msra.mxu0 0.0
        %520 = vmatprep.mubr.f32.mxu0 0.0
        %521 = vmatmul.mubr.f32.gmra.mrb[0].mxu0 %v433
        %v522 = vpop.f32.mrb[0].mxu0
        %v523 = vadd.f32 0.0, %v522
        %v524 = vpop.f32.mrb[0].mxu0
        %v525 = vadd.f32 0.0, %v524
        %526 = vmatprep.mubr.f32.mxu0 0.0
        %527 = vmatmul.mubr.f32.gmra.mrb[0].mxu0 %v436
        %v528 = vpop.f32.mrb[0].mxu0
        %v529 = vadd.f32 0.0, %v528
        %v530 = vpop.f32.mrb[0].mxu0
        %v531 = vadd.f32 0.0, %v530
        %532 = vmatprep.mubr.f32.mxu0 0.0
        %533 = vmatmul.mubr.f32.gmra.mrb[0].mxu0 %v439
        %v534 = vpop.f32.mrb[0].mxu0
        %v535 = vadd.f32 0.0, %v534
        %v536 = vpop.f32.mrb[0].mxu0
        %v537 = vadd.f32 0.0, %v536
        %538 = vmatprep.mubr.f32.mxu0 0.0
        %539 = vmatmul.mubr.f32.gmra.mrb[0].mxu0 %v442
        %v540 = vpop.f32.mrb[0].mxu0
        %v541 = vadd.f32 0.0, %v540
        %v542 = vpop.f32.mrb[0].mxu0
        %v543 = vadd.f32 0.0, %v542
        %544 = vmatprep.mubr.f32.mxu0 0.0
        %545 = vmatmul.mubr.f32.gmra.mrb[0].mxu0 %v445
        %v546 = vpop.f32.mrb[0].mxu0
        %v547 = vadd.f32 0.0, %v546
        %v548 = vpop.f32.mrb[0].mxu0
        %v549 = vadd.f32 0.0, %v548
        %550 = vmatprep.mubr.f32.mxu0 0.0
        %551 = vmatmul.mubr.f32.gmra.mrb[0].mxu0 %v448
        %v552 = vpop.f32.mrb[0].mxu0
        %v553 = vadd.f32 0.0, %v552
        %v554 = vpop.f32.mrb[0].mxu0
        %v555 = vadd.f32 0.0, %v554
        %556 = vmatprep.mubr.f32.mxu0 0.0
        %557 = vmatmul.mubr.f32.gmra.mrb[0].mxu0 %v451
        %v558 = vpop.f32.mrb[0].mxu0
        %v559 = vadd.f32 0.0, %v558
        %v560 = vpop.f32.mrb[0].mxu0
        %v561 = vadd.f32 0.0, %v560
        %562 = vmatprep.mubr.f32.mxu0 0.0
        %563 = vmatmul.mubr.f32.gmra.mrb[0].mxu0 %v454
        %v564 = vpop.f32.mrb[0].mxu0
        %v565 = vadd.f32 0.0, %v564
        %v566 = vpop.f32.mrb[0].mxu0
        %v567 = vadd.f32 0.0, %v566
        %568 = vdwg.mxu0
        %v569 = vmul.f32 %v523, %v427
        %v570 = vmul.f32 %v525, %v428
        %v571 = vmul.f32 %v529, %v429
        %v572 = vmul.f32 %v531, %v430
        %v573 = vadd.f32 %v569, %v571
        %v574 = vrot.slane %v573, 4
        %v575 = vadd.f32 %v573, %v574
        %v576 = vrot.slane %v575, 2
        %v577 = vadd.f32 %v575, %v576
        %v578 = vrot.slane %v577, 1
        %v579 = vadd.f32 %v577, %v578
        %v580 = vadd.f32 %v570, %v572
        %v581 = vrot.slane %v580, 4
        %v582 = vadd.f32 %v580, %v581
        %v583 = vrot.slane %v582, 2
        %v584 = vadd.f32 %v582, %v583
        %v585 = vrot.slane %v584, 1
        %v586 = vadd.f32 %v584, %v585
        %v587 = vmul.f32 %v535, %v427
        %v588 = vmul.f32 %v537, %v428
        %v589 = vmul.f32 %v541, %v429
        %v590 = vmul.f32 %v543, %v430
        %v591 = vadd.f32 %v587, %v589
        %v592 = vrot.slane %v591, 4
        %v593 = vadd.f32 %v591, %v592
        %v594 = vrot.slane %v593, 2
        %v595 = vadd.f32 %v593, %v594
        %v596 = vrot.slane %v595, 1
        %v597 = vadd.f32 %v595, %v596
        %v598 = vadd.f32 %v588, %v590
        %v599 = vrot.slane %v598, 4
        %v600 = vadd.f32 %v598, %v599
        %v601 = vrot.slane %v600, 2
        %v602 = vadd.f32 %v600, %v601
        %v603 = vrot.slane %v602, 1
        %v604 = vadd.f32 %v602, %v603
        %v605 = vmul.f32 %v547, %v427
        %v606 = vmul.f32 %v549, %v428
        %v607 = vmul.f32 %v553, %v429
        %v608 = vmul.f32 %v555, %v430
        %v609 = vadd.f32 %v605, %v607
        %v610 = vrot.slane %v609, 4
        %v611 = vadd.f32 %v609, %v610
        %v612 = vrot.slane %v611, 2
        %v613 = vadd.f32 %v611, %v612
        %v614 = vrot.slane %v613, 1
        %v615 = vadd.f32 %v613, %v614
        %v616 = vadd.f32 %v606, %v608
        %v617 = vrot.slane %v616, 4
        %v618 = vadd.f32 %v616, %v617
        %v619 = vrot.slane %v618, 2
        %v620 = vadd.f32 %v618, %v619
        %v621 = vrot.slane %v620, 1
        %v622 = vadd.f32 %v620, %v621
        %v623 = vmul.f32 %v559, %v427
        %v624 = vmul.f32 %v561, %v428
        %v625 = vmul.f32 %v565, %v429
        %v626 = vmul.f32 %v567, %v430
        %v627 = vadd.f32 %v623, %v625
        %v628 = vrot.slane %v627, 4
        %v629 = vadd.f32 %v627, %v628
        %v630 = vrot.slane %v629, 2
        %v631 = vadd.f32 %v629, %v630
        %v632 = vrot.slane %v631, 1
        %v633 = vadd.f32 %v631, %v632
        %v634 = vadd.f32 %v624, %v626
        %v635 = vrot.slane %v634, 4
        %v636 = vadd.f32 %v634, %v635
        %v637 = vrot.slane %v636, 2
        %v638 = vadd.f32 %v636, %v637
        %v639 = vrot.slane %v638, 1
        %v640 = vadd.f32 %v638, %v639
        %vm641 = vcmask 1040384
        %v642 = vsel %vm641, %v579, %v597
        %v643 = vsel %vm641, %v586, %v604
        %vm644 = vcmask 1041408
        %v645 = vsel %vm644, %v642, %v615
        %v646 = vsel %vm644, %v643, %v622
        %vm647 = vcmask 1042432
        %v648 = vsel %vm647, %v645, %v633
        %v649 = vsel %vm647, %v646, %v640
        %v652 = vcombine.low %v648, %v649
        %v654 = vsub.f32 %v286, %v652
        %v655 = vand.u32 2147483647, %v654
        %v657 = vcombine.high %v655, %v655
        %vm659 = vcmask 1043456
        %v660 = vsel %vm659, %v655, 0.0
        %v661 = vsel %vm659, %v657, 0.0
        %v662 = vadd.f32 %v660, %v661
        %663 = vadd.xlane.f32.xlu0 %v662
        %v664 = vpop.xlane.xlu0 %663
        %v665 = vrot.slane %v664, 4
        %v666 = vadd.f32 %v664, %v665
        %v667 = vrot.slane %v666, 2
        %v668 = vadd.f32 %v666, %v667
        %v669 = vrot.slane %v668, 1
        %v670 = vadd.f32 %v668, %v669
        %s671 = vtos %v670
        %v672 = vstv %s671
        %673 = vst [vmem:[%s283] sm:$0xff] %v672
        %s674 = sand.u32 %s127, 1
        %s675 = scalar_lea.sflag [#allocation4], %s674
        %s676 = sand.u32 %s127, 1
        %s677 = smul.addr %s676, 8
        %s678 = scalar_lea.vmem [#allocation8], %s677
        // Predicated region
        $region45: #{tpu_custom_call.1} parent=31 // pred_check
          %p679 = pneg %p137
        $region46: #{tpu_custom_call.1} parent=31 // pred_check_branch
          %681 = sbr.rel (%p679) target = $region48
        $region47: #{tpu_custom_call.1} parent=31 // pred_region
          %s683 = ssub.s32 128, 128
          %684 = vsyncadd %s675, %s683
          %s685 = sadd.s32 %s28, %s27
          %s686 = smul.addr %s685, 128
          %s687 = scalar_lea.hbm %s3, %s686
          %s689 = sshll.u32 %s678, 4
          %s690 = int_to_ptr.vmem [resolvable:$true] %s689
          %692 = dma.vmem_to_hbm [thread:$0]  %s690, 128, %s687, %s675
        $region48: #{tpu_custom_call.1} parent=31 // pred_fallthru
          _
      $region32: #{tpu_custom_call.1} parent=5 // pred_fallthru
        _
      %p693 = scmp.le.s32.totalorder 2, %s18
      // Predicated region
      $region49: #{tpu_custom_call.1} parent=5 // pred_check
        %p694 = pneg %p693
      $region50: #{tpu_custom_call.1} parent=5 // pred_check_branch
        %696 = sbr.rel (%p694) target = $region52
      $region51: #{tpu_custom_call.1} parent=5 // pred_region
        %s697 = ssub.s32 %s18, 2
        // Predicated region
        $region53: #{tpu_custom_call.1} parent=51 // pred_check
          %p698 = pneg %p143
        $region54: #{tpu_custom_call.1} parent=51 // pred_check_branch
          %700 = sbr.rel (%p698) target = $region56
        $region55: #{tpu_custom_call.1} parent=51 // pred_region
          %s701 = sand.u32 %s128, 1
          %s702 = scalar_lea.sflag [#allocation4], %s701
          %s703 = sand.u32 %s128, 1
          %s704 = smul.addr %s703, 8
          %s705 = scalar_lea.vmem [#allocation8], %s704
          %706 = dma.done %s702, 128
        $region56: #{tpu_custom_call.1} parent=51 // pred_fallthru
          _
      $region52: #{tpu_custom_call.1} parent=5 // pred_fallthru
        _
    $region6: #{tpu_custom_call.1} parent=1 // loop_footer
      %s22 = sadd.s32 1, %s18
    $region7: #{tpu_custom_call.1} parent=1 // loop_footer_branch
      %17 = sbr.rel target = $region3
    $region8: #{tpu_custom_call.1} parent=1 // loop_exit
      _
    %707 = vsyncpa [#allocation3], 1
    %s708 = scalar_lea.sflag [#allocation3], 1
    %709 = vsyncpa %s708, 1
    %710 = vsyncpa [#allocation6], 1
    %s711 = scalar_lea.sflag [#allocation6], 1
    %712 = vsyncpa %s711, 1
    %713 = vsyncpa [#allocation4], 1
    %s714 = scalar_lea.sflag [#allocation4], 1
    %715 = vsyncpa %s714, 1

</llo_original>
